<compile_context>
chip_gen: v7x
topology: tpu7x:2x2x1
jax: 0.10.0
libtpu: 0.0.40
codegen_flags: <defaults>
</compile_context>

<pallas_src>
import math
import functools

import numpy as np
import jax
import jax.numpy as jnp
from jax.experimental import pallas as pl
from jax.experimental.pallas import tpu as pltpu


# ----------------------------------------------------------------------------
# Helpers
# ----------------------------------------------------------------------------
def _sublane_multiple(dtype):
    """Sublane packing multiple: 8 for f32, 16 for bf16, 32 for 8-bit."""
    return 8 * (4 // np.dtype(dtype).itemsize)


def _pick_tile(n, target, mult):
    """Largest divisor of n that is a multiple of `mult` and <= target.
    Returns None if no such divisor exists (caller then uses a full-dim
    block, which is always tiling-legal)."""
    t = min(target, n)
    t -= t % mult
    while t >= mult:
        if n % t == 0:
            return t
        t -= mult
    return None


@functools.lru_cache(maxsize=None)
def _vmem_limit_bytes():
    """Generation-aware VMEM budget: ~75% of physical VMEM (v5e/v6e: 128 MiB,
    v7x: 64 MiB), capped at 100 MiB.  Conservative 48 MiB fallback."""
    try:
        cap = int(pltpu.get_tpu_info().vmem_capacity_bytes)
    except Exception:
        cap = 64 * 1024 * 1024
    return int(min(cap * 3 // 4, 100 * 1024 * 1024))


@functools.lru_cache(maxsize=None)
def _recommended_compute_dtype():
    """bf16 operands (with f32 accumulation) on bf16-native MXUs (v6e/v7x);
    f32 on v5e and older (no bf16 VPU/EUP -> bf16 elementwise only adds
    converts there)."""
    try:
        kind = jax.devices()[0].device_kind.lower()
    except Exception:
        return jnp.float32
    return jnp.bfloat16 if ("v6" in kind or "v7" in kind) else jnp.float32


# ----------------------------------------------------------------------------
# Kernel 1: dense projection  y = x @ W   (f32 accumulation on the MXU)
# ----------------------------------------------------------------------------
def _matmul_kernel_fullk(x_ref, w_ref, o_ref):
    # Single K tile, single N tile: no accumulator scratch, no init/flush.
    o_ref[...] = jnp.dot(
        x_ref[...], w_ref[...], preferred_element_type=jnp.float32
    ).astype(o_ref.dtype)


def _matmul_kernel_acc(x_ref, w_ref, o_ref, acc_ref):
    @pl.when(pl.program_id(2) == 0)
    def _():
        acc_ref[...] = jnp.zeros_like(acc_ref)

    acc_ref[...] += jnp.dot(
        x_ref[...], w_ref[...], preferred_element_type=jnp.float32
    )

    @pl.when(pl.program_id(2) == pl.num_programs(2) - 1)
    def _():
        o_ref[...] = acc_ref[...].astype(o_ref.dtype)


def linear_pallas(x2d, w, *, out_dtype=jnp.float32, compute_dtype=jnp.float32):
    """x2d: (M, K), w: (K, N) -> (M, N) in out_dtype, f32 accumulation."""
    M, K = x2d.shape
    Kw, N = w.shape
    assert K == Kw

    x2d = x2d.astype(compute_dtype)
    w = w.astype(compute_dtype)
    sub = _sublane_multiple(compute_dtype)
    itemsize = np.dtype(compute_dtype).itemsize
    vmem_limit = _vmem_limit_bytes()

    # M tile: big (target 512), divisor of M (no activation padding copy),
    # dtype-aware sublane multiple; full-M block as last resort (always legal).
    tm = _pick_tile(M, 512, sub) or M

    if K * N * itemsize <= 8 * 1024 * 1024:
        # MHA projection case (K = D, N <= 3D): full-K / full-N weight block.
        # Activation and weight are each DMA'd from HBM exactly once.
        return pl.pallas_call(
            _matmul_kernel_fullk,
            out_shape=jax.ShapeDtypeStruct((M, N), out_dtype),
            grid_spec=pltpu.PrefetchScalarGridSpec(
                num_scalar_prefetch=0,
                grid=(M // tm,),
                in_specs=[
                    pl.BlockSpec((tm, K), lambda i: (i, 0)),
                    pl.BlockSpec((K, N), lambda i: (0, 0)),   # resident weight
                ],
                out_specs=pl.BlockSpec((tm, N), lambda i: (i, 0)),
            ),
            compiler_params=pltpu.CompilerParams(
                dimension_semantics=("parallel",),
                vmem_limit_bytes=vmem_limit,
            ),
            cost_estimate=pl.CostEstimate(
                flops=2 * M * N * K,
                transcendentals=0,
                bytes_accessed=(M * K + K * N + M * N) * itemsize,
            ),
        )(x2d, w)

    # General tiled fallback (large K or N): f32 accumulator scratch.
    tk = _pick_tile(K, 512, 128) or K
    tn = _pick_tile(N, 1024, 128) or N
    return pl.pallas_call(
        _matmul_kernel_acc,
        out_shape=jax.ShapeDtypeStruct((M, N), out_dtype),
        grid_spec=pltpu.PrefetchScalarGridSpec(
            num_scalar_prefetch=0,
            grid=(M // tm, N // tn, K // tk),
            in_specs=[
                pl.BlockSpec((tm, tk), lambda i, j, k: (i, k)),
                pl.BlockSpec((tk, tn), lambda i, j, k: (k, j)),
            ],
            out_specs=pl.BlockSpec((tm, tn), lambda i, j, k: (i, j)),
            scratch_shapes=[pltpu.VMEM((tm, tn), jnp.float32)],
        ),
        compiler_params=pltpu.CompilerParams(
            dimension_semantics=("parallel", "parallel", "arbitrary"),
            vmem_limit_bytes=vmem_limit,
        ),
        cost_estimate=pl.CostEstimate(
            flops=2 * M * N * K,
            transcendentals=0,
            bytes_accessed=(M * K * (N // tn) + K * N * (M // tm) + M * N)
            * itemsize,
        ),
    )(x2d, w)


# ----------------------------------------------------------------------------
# Kernel 2: multi-head scaled-dot-product attention, lane-dense (B, L, D) I/O,
# KV-tiled online softmax.  grid = (B, Lq_tiles, Lk_tiles), last axis is the
# softmax reduction ("arbitrary").  Heads are read via static ref lane-slices
# and accumulated into per-head f32 scratch; the (tq, D) output tile is
# written with a single full-width lane-dense store at the last KV tile.
# valid_lens rides in via scalar prefetch (SMEM); mask fill is -1e6, exactly
# matching masked_softmax.  Dropout = identity (inference).
# ----------------------------------------------------------------------------
def _attn_kernel(vlen_ref, q_ref, k_ref, v_ref, o_ref, m_sc, l_sc, acc_sc, *,
                 scale, use_mask, num_heads, head_dim):
    b = pl.program_id(0)
    ki = pl.program_id(2)
    nk = pl.num_programs(2)

    @pl.when(ki == 0)
    def _():
        m_sc[...] = jnp.full_like(m_sc, -jnp.inf)
        l_sc[...] = jnp.zeros_like(l_sc)
        acc_sc[...] = jnp.zeros_like(acc_sc)

    tq = q_ref.shape[0]
    tkv = k_ref.shape[0]

    if use_mask:
        col = jax.lax.broadcasted_iota(jnp.int32, (tq, tkv), 1) + ki * tkv
        keep = col < vlen_ref[b]

    for h in range(num_heads):                      # static unroll over heads
        sl = slice(h * head_dim, (h + 1) * head_dim)
        # Static ref slices: zero-cost views, no materialized full-tile copies.
        q_h = q_ref[:, sl]                          # (tq, dh)
        k_h = k_ref[:, sl]                          # (tkv, dh)
        v_h = v_ref[:, sl]                          # (tkv, dh)

        # Q_h @ K_h^T without materializing a transpose; scale in f32 to
        # match the reference exactly (negligible VPU cost vs. the exp).
        s = jax.lax.dot_general(
            q_h, k_h, (((1,), (1,)), ((), ())),
            preferred_element_type=jnp.float32) * scale      # (tq, tkv) f32

        if use_mask:
            s = jnp.where(keep, s, -1000000.0)

        # Online softmax (f32 stats).
        # TODO(synk): on v6e/v7x the exp (EUP) can bind before the MXU for
        # dh<=128; bf16 exp of the numerator is a possible further win.
        m_prev = m_sc[h]                                      # (tq, 1)
        m_new = jnp.maximum(m_prev, jnp.max(s, axis=-1, keepdims=True))
        alpha = jnp.exp(m_prev - m_new)
        p = jnp.exp(s - m_new)
        l_sc[h] = alpha * l_sc[h] + jnp.sum(p, axis=-1, keepdims=True)
        acc_sc[h] = alpha * acc_sc[h] + jnp.dot(
            p.astype(v_h.dtype), v_h, preferred_element_type=jnp.float32)
        m_sc[h] = m_new

    @pl.when(ki == nk - 1)
    def _():
        # Normalize per head, then ONE full-width lane-dense store.
        outs = []
        for h in range(num_heads):
            inv = pl.reciprocal(l_sc[h], approx=True)         # EUP slot
            outs.append(acc_sc[h] * inv)
        o_ref[...] = jnp.concatenate(outs, axis=-1).astype(o_ref.dtype)


def attention_pallas(q, k, v, valid_lens, num_heads, *,
                     compute_dtype=jnp.float32):
    """q: (B, Lq, D), k/v: (B, Lk, D), valid_lens: (B,) int32 or None."""
    B, Lq, D = q.shape
    _, Lk, _ = k.shape
    assert D % num_heads == 0
    dh = D // num_heads
    scale = 1.0 / math.sqrt(dh)

    use_mask = valid_lens is not None
    if valid_lens is None:
        valid_lens = jnp.zeros((B,), jnp.int32)   # unused placeholder

    q = q.astype(compute_dtype)
    k = k.astype(compute_dtype)
    v = v.astype(compute_dtype)

    sub = _sublane_multiple(compute_dtype)
    tq = _pick_tile(Lq, 256, sub) or Lq
    tkv = _pick_tile(Lk, 512, sub) or Lk
    nq, nk = Lq // tq, Lk // tkv

    kernel = functools.partial(_attn_kernel, scale=scale, use_mask=use_mask,
                               num_heads=num_heads, head_dim=dh)

    grid_spec = pltpu.PrefetchScalarGridSpec(
        num_scalar_prefetch=1,
        grid=(B, nq, nk),
        in_specs=[
            pl.BlockSpec((None, tq, D), lambda b, i, j, vl: (b, i, 0)),
            pl.BlockSpec((None, tkv, D), lambda b, i, j, vl: (b, j, 0)),
            pl.BlockSpec((None, tkv, D), lambda b, i, j, vl: (b, j, 0)),
        ],
        out_specs=pl.BlockSpec((None, tq, D), lambda b, i, j, vl: (b, i, 0)),
        scratch_shapes=[
            pltpu.VMEM((num_heads, tq, 1), jnp.float32),    # running max
            pltpu.VMEM((num_heads, tq, 1), jnp.float32),    # running denom
            pltpu.VMEM((num_heads, tq, dh), jnp.float32),   # running output
        ],
    )

    itemsize = np.dtype(compute_dtype).itemsize
    return pl.pallas_call(
        kernel,
        out_shape=jax.ShapeDtypeStruct((B, Lq, D), compute_dtype),
        grid_spec=grid_spec,
        compiler_params=pltpu.CompilerParams(
            dimension_semantics=("parallel", "parallel", "arbitrary"),
            vmem_limit_bytes=_vmem_limit_bytes(),
        ),
        cost_estimate=pl.CostEstimate(
            flops=4 * B * Lq * Lk * D,
            transcendentals=B * num_heads * Lq * Lk,
            bytes_accessed=(2 * B * Lq * D + 2 * B * Lk * D * nq) * itemsize,
        ),
    )(valid_lens.astype(jnp.int32), q, k, v)


# ----------------------------------------------------------------------------
# Full module forward (weights stored as (in, out): y = x @ W == x @ W_pt.T)
# ----------------------------------------------------------------------------
def prepare_params(params):
    """Hoist the fused-QKV weight concat out of the per-call path."""
    if "W_qkv" not in params:
        params = dict(params)
        params["W_qkv"] = jnp.concatenate(
            [params["W_q"], params["W_k"], params["W_v"]], axis=1)
    return params


def multi_head_attention(params, queries, keys, values, valid_lens, num_heads,
                         *, compute_dtype=None):
    # bf16 operands on v6e/v7x (f32 accumulation everywhere), f32 on v5e.
    if compute_dtype is None:
        compute_dtype = _recommended_compute_dtype()

    D = params["W_q"].shape[1]

    def proj(x, w, out_dtype):
        B_, L_, Din = x.shape
        y = linear_pallas(x.reshape(B_ * L_, Din), w,
                          out_dtype=out_dtype, compute_dtype=compute_dtype)
        return y.reshape(B_, L_, w.shape[1])

    if queries is keys and keys is values:
        # Self-attention: fused QKV projection — activation read from HBM once.
        w_qkv = params.get("W_qkv")
        if w_qkv is None:   # not pre-fused; concat on the fly (slower path)
            w_qkv = jnp.concatenate(
                [params["W_q"], params["W_k"], params["W_v"]], axis=1)
        qkv = proj(queries, w_qkv, compute_dtype)
        q, k, v = qkv[..., :D], qkv[..., D:2 * D], qkv[..., 2 * D:]
    else:
        q = proj(queries, params["W_q"], compute_dtype)
        k = proj(keys,    params["W_k"], compute_dtype)
        v = proj(values,  params["W_v"], compute_dtype)

    # TODO(synk): only 1-D (per-batch) valid_lens are supported, matching the
    # MultiHeadAttention usage; 2-D per-query valid_lens are not implemented.
    vl = None if valid_lens is None else valid_lens.astype(jnp.int32)

    # Head split/merge happens inside the kernel; the output is already in
    # (B, Lq, num_hiddens) layout, so W_o consumes it directly (no transposes).
    ctx = attention_pallas(q, k, v, vl, num_heads, compute_dtype=compute_dtype)

    B_, Lq_, _ = ctx.shape
    out = linear_pallas(ctx.reshape(B_ * Lq_, D), params["W_o"],
                        out_dtype=jnp.float32, compute_dtype=compute_dtype)
    return out.reshape(B_, Lq_, params["W_o"].shape[1])


# ----------------------------------------------------------------------------
# Pure-JAX reference (mirrors the PyTorch module, f32) for sanity checking
# ----------------------------------------------------------------------------
def transpose_qkv(x, num_heads):
    B, L, H = x.shape
    x = x.reshape(B, L, num_heads, H // num_heads)
    x = jnp.transpose(x, (0, 2, 1, 3))
    return x.reshape(B * num_heads, L, H // num_heads)


def transpose_output(x, num_heads):
    BH, L, dh = x.shape
    x = x.reshape(BH // num_heads, num_heads, L, dh)
    x = jnp.transpose(x, (0, 2, 1, 3))
    return x.reshape(BH // num_heads, L, num_heads * dh)


def reference_mha(params, queries, keys, values, valid_lens, num_heads):
    def proj(x, w):
        return jnp.einsum("bld,dh->blh", x, w)

    q = transpose_qkv(proj(queries, params["W_q"]), num_heads)
    k = transpose_qkv(proj(keys, params["W_k"]), num_heads)
    v = transpose_qkv(proj(values, params["W_v"]), num_heads)
    d = q.shape[-1]
    scores = jnp.einsum("bqd,bkd->bqk", q, k) / math.sqrt(d)
    if valid_lens is not None:
        vl = jnp.repeat(valid_lens.astype(jnp.int32), num_heads, axis=0)
        col = jnp.arange(scores.shape[-1])[None, None, :]
        scores = jnp.where(col < vl[:, None, None], scores, -1000000.0)
    w = jax.nn.softmax(scores, axis=-1)
    out = jnp.einsum("bqk,bkd->bqd", w, v)
    out_concat = transpose_output(out, num_heads)
    return jnp.einsum("bld,dh->blh", out_concat, params["W_o"])


if __name__ == "__main__":
    # Small deterministic problem
    B, Lq, Lk = 2, 8, 8
    query_size = key_size = value_size = 16
    num_hiddens, num_heads = 32, 4

    root = jax.random.PRNGKey(0)
    ks = jax.random.split(root, 10)

    scale = 0.1
    params = {
        "W_q": scale * jax.random.normal(ks[0], (query_size, num_hiddens), jnp.float32),
        "W_k": scale * jax.random.normal(ks[1], (key_size, num_hiddens), jnp.float32),
        "W_v": scale * jax.random.normal(ks[2], (value_size, num_hiddens), jnp.float32),
        "W_o": scale * jax.random.normal(ks[3], (num_hiddens, num_hiddens), jnp.float32),
    }
    params = prepare_params(params)   # fused-QKV weight hoisted out of calls

    queries = jax.random.normal(ks[4], (B, Lq, query_size), jnp.float32)
    keys = jax.random.normal(ks[5], (B, Lk, key_size), jnp.float32)
    values = jax.random.normal(ks[6], (B, Lk, value_size), jnp.float32)
    valid_lens = jnp.array([3, 6], dtype=jnp.int32)

    # 1) Cross-attention, masked, explicit f32 operands (tight tolerance).
    out = multi_head_attention(params, queries, keys, values, valid_lens,
                               num_heads, compute_dtype=jnp.float32)
    out = jax.block_until_ready(out)
    ref = reference_mha(params, queries, keys, values, valid_lens, num_heads)
    assert out.shape == (B, Lq, num_hiddens)
    assert jnp.allclose(out, ref, atol=2e-3, rtol=2e-3), "cross-attn mismatch"

    # 2) Self-attention (q=k=v): fused-QKV path, no mask, generation-default
    #    compute dtype (bf16 on v6e/v7x, f32 on v5e).
    x = jax.random.normal(ks[7], (B, Lq, query_size), jnp.float32)
    out_sa = multi_head_attention(params, x, x, x, None, num_heads)
    out_sa = jax.block_until_ready(out_sa)
    ref_sa = reference_mha(params, x, x, x, None, num_heads)
    auto_f32 = _recommended_compute_dtype() == jnp.float32
    tol = dict(atol=2e-3, rtol=2e-3) if auto_f32 else dict(atol=5e-2, rtol=5e-2)
    assert jnp.allclose(out_sa.astype(jnp.float32), ref_sa, **tol), "self-attn mismatch"

    # 3) Explicit bf16-operand path (v6e/v7x MXU); f32 accumulation.
    out_bf16 = multi_head_attention(params, queries, keys, values, valid_lens,
                                    num_heads, compute_dtype=jnp.bfloat16)
    out_bf16 = jax.block_until_ready(out_bf16)
    assert jnp.allclose(out_bf16.astype(jnp.float32), ref,
                        atol=5e-2, rtol=5e-2), "bf16 mismatch"

    # 4) Longer sequences: exercises multi-tile online softmax (nq>1, nk>1)
    #    including fully-masked KV tiles, f32 operands.
    Lq2, Lk2 = 512, 1024
    q2 = jax.random.normal(ks[8], (B, Lq2, query_size), jnp.float32)
    kv2 = jax.random.normal(ks[9], (B, Lk2, key_size), jnp.float32)
    vlens2 = jnp.array([100, 700], dtype=jnp.int32)
    out2 = multi_head_attention(params, q2, kv2, kv2, vlens2, num_heads,
                                compute_dtype=jnp.float32)
    out2 = jax.block_until_ready(out2)
    ref2 = reference_mha(params, q2, kv2, kv2, vlens2, num_heads)
    assert jnp.allclose(out2, ref2, atol=2e-3, rtol=2e-3), "long-seq mismatch"

    print("KERNEL_OK")
</pallas_src>

<mosaic_0001>
module attributes {stable_mosaic.version = 11 : i64} {
  func.func @_matmul_kernel_fullk(%arg0: i32, %arg1: memref<16x16xf32, #tpu.memory_space<vmem>>, %arg2: memref<16x32xf32, #tpu.memory_space<vmem>>, %arg3: memref<16x32xf32, #tpu.memory_space<vmem>>) attributes {dimension_semantics = [#tpu.dimension_semantics<parallel>], iteration_bounds = array<i64: 1>, scalar_prefetch = 0 : i64, scratch_operands = 0 : i64, tpu.core_type = #tpu.core_type<tc>, window_params = [{transform_indices = @transform_0, window_bounds = array<i64: 16, 16>}, {pipeline_mode = #tpu.pipeline_mode<synchronous>, transform_indices = @transform_1, window_bounds = array<i64: 16, 32>}, {transform_indices = @transform_2, window_bounds = array<i64: 16, 32>}]} {
    %c0 = arith.constant 0 : index
    %c0_0 = arith.constant 0 : index
    %0 = vector.load %arg1[%c0, %c0_0] : memref<16x16xf32, #tpu.memory_space<vmem>>, vector<16x16xf32>
    %c0_1 = arith.constant 0 : index
    %c0_2 = arith.constant 0 : index
    %1 = vector.load %arg2[%c0_1, %c0_2] : memref<16x32xf32, #tpu.memory_space<vmem>>, vector<16x32xf32>
    %cst = arith.constant dense<0.000000e+00> : vector<16x32xf32>
    %2 = tpu.matmul %0, %1, %cst {dimension_numbers = #tpu.dot_dimension_numbers<[1], [0], [0], [1], [0, 0, 1, 1], [], []>} : vector<16x16xf32>, vector<16x32xf32>, vector<16x32xf32> -> vector<16x32xf32>
    %c0_3 = arith.constant 0 : index
    %c0_4 = arith.constant 0 : index
    %3 = vector.load %arg3[%c0_3, %c0_4] : memref<16x32xf32, #tpu.memory_space<vmem>>, vector<16x32xf32>
    tpu.vector_store %arg3[%c0_3, %c0_4], %2 {strides = array<i32>} : memref<16x32xf32, #tpu.memory_space<vmem>>, vector<16x32xf32>,
    return
  }
  func.func @transform_0(%arg0: i32) -> (i32, i32) {
    %c0_i32 = arith.constant 0 : i32
    %c0_i32_0 = arith.constant 0 : i32
    return %arg0, %c0_i32 : i32, i32
  }
  func.func @transform_1(%arg0: i32) -> (i32, i32) {
    %c0_i32 = arith.constant 0 : i32
    %c0_i32_0 = arith.constant 0 : i32
    %c0_i32_1 = arith.constant 0 : i32
    return %c0_i32, %c0_i32_0 : i32, i32
  }
  func.func @transform_2(%arg0: i32) -> (i32, i32) {
    %c0_i32 = arith.constant 0 : i32
    %c0_i32_0 = arith.constant 0 : i32
    return %arg0, %c0_i32 : i32, i32
  }
}

</mosaic_0001>

<llo_original>
// kernel: tpu_custom_call.1
$region0: #{tpu_custom_call.1}
  #allocation0 [shape = 'u32[]', space=smem, size = 0x4, offset = 0x4, fixed_abs, tag = 'smem constant byte address 0x4 - core index']
  #allocation1 [shape = 'u32[144,128]{1,0:T(1,128)}', space=vmem, size = 0x12000, scoped, tag = 'internal scratch']
  %s0 = inlined_call_operand.hbm [shape: f32[16,16], index: 0, kind: input, shape index: {}]
  %s1 = inlined_call_operand.hbm [shape: f32[16,32], index: 1, kind: input, shape index: {}]
  %s2 = inlined_call_operand.hbm [shape: f32[16,32], index: 2, kind: output, shape index: {}]
  %s3 = sld [smem:[#allocation0]]
  $region26: #{tpu_custom_call.1} parent=0
    _
  %s5 = ssub.s32 1, %s3
  %s6 = scalar_select 0, %s5, %s3
  $region1: #{tpu_custom_call.1} parent=0
    #allocation2 [shape = 'u8[8192]{0}', space=vmem, size = 0x2000, scoped, tag = 'input window, operand 0, single buffered']
    #allocation3 [shape = 's32[1]{0}', space=sflag, size = 0x4, scoped, tag = 'scoped memory for tpu_custom_call.1']
    #allocation4 [shape = 's32[1]{0}', space=sflag, size = 0x4, scoped, tag = 'scoped memory for tpu_custom_call.1']
    #allocation5 [shape = 'u8[8192]{0}', space=vmem, size = 0x2000, scoped, tag = 'input window, operand 1, single buffered']
    #allocation6 [shape = 's32[1]{0}', space=sflag, size = 0x4, scoped, tag = 'scoped memory for tpu_custom_call.1']
    #allocation7 [shape = 'u8[8192]{0}', space=vmem, size = 0x2000, scoped, tag = 'output window, operand 0, single buffered']
    %7 = vsyncpa [#allocation3], 0
    %8 = vsyncpa [#allocation6], 0
    %9 = vsyncpa [#allocation4], 0
    // Predicated region
    $region2: #{tpu_custom_call.1} parent=1 // pred_check
      _
    $region3: #{tpu_custom_call.1} parent=1 // pred_check_branch
      %11 = sbr.rel (0) target = $region5
    $region4: #{tpu_custom_call.1} parent=1 // pred_region
      %s13 = ssub.s32 256, 256
      %14 = vsyncadd [#allocation3], %s13
      %s15 = sshll.u32 [#allocation2], 4
      %s16 = int_to_ptr.vmem [resolvable:$true] %s15
      %21 = dma.hbm_to_vmem [thread:$0]  %s0, 256, %s16, [#allocation3], 128, 128, 8
    $region5: #{tpu_custom_call.1} parent=1 // pred_fallthru
      _
    // Predicated region
    $region6: #{tpu_custom_call.1} parent=1 // pred_check
      _
    $region7: #{tpu_custom_call.1} parent=1 // pred_check_branch
      %23 = sbr.rel (0) target = $region9
    $region8: #{tpu_custom_call.1} parent=1 // pred_region
      %s25 = ssub.s32 256, 256
      %26 = vsyncadd [#allocation6], %s25
      %s27 = sshll.u32 [#allocation5], 4
      %s28 = int_to_ptr.vmem [resolvable:$true] %s27
      %33 = dma.hbm_to_vmem [thread:$0]  %s1, 256, %s28, [#allocation6], 128, 128, 8
    $region9: #{tpu_custom_call.1} parent=1 // pred_fallthru
      _
    // Predicated region
    $region10: #{tpu_custom_call.1} parent=1 // pred_check
      _
    $region11: #{tpu_custom_call.1} parent=1 // pred_check_branch
      %35 = sbr.rel (0) target = $region13
    $region12: #{tpu_custom_call.1} parent=1 // pred_region
      %36 = dma.done [#allocation3], 256
    $region13: #{tpu_custom_call.1} parent=1 // pred_fallthru
      _
    // Predicated region
    $region14: #{tpu_custom_call.1} parent=1 // pred_check
      _
    $region15: #{tpu_custom_call.1} parent=1 // pred_check_branch
      %38 = sbr.rel (0) target = $region17
    $region16: #{tpu_custom_call.1} parent=1 // pred_region
      %39 = dma.done [#allocation6], 256
    $region17: #{tpu_custom_call.1} parent=1 // pred_fallthru
      _
    %v40 = vld [vmem:[#allocation2] sm:$0xff]
    %v41 = vld [vmem:[#allocation2 + $0x8] sm:$0xff]
    %v42 = vld [vmem:[#allocation5] sm:$0xff]
    %v43 = vld [vmem:[#allocation5 + $0x8] sm:$0xff]
    %vm44 = vcmask 130048
    %v46 = vsel %vm44, %v40, 0
    %v49 = vsel %vm44, %v41, 0
    %51 = vmatprep.subr.mxu0 0.0
    %52 = vmatpush1.msra.mxu0 %v42
    %53 = vmatprep.subr.mxu0 0.0
    %54 = vmatpush1.msra.mxu0 %v43
    %55 = vmatprep.subr.mxu0 0.0
    %56 = vmatpush1.msra.mxu0 0.0
    %57 = vmatprep.subr.mxu0 0.0
    %58 = vmatpush1.msra.mxu0 0.0
    %59 = vmatprep.subr.mxu0 0.0
    %60 = vmatpush1.msra.mxu0 0.0
    %61 = vmatprep.subr.mxu0 0.0
    %62 = vmatpush1.msra.mxu0 0.0
    %63 = vmatprep.subr.mxu0 0.0
    %64 = vmatpush1.msra.mxu0 0.0
    %65 = vmatprep.subr.mxu0 0.0
    %66 = vmatpush1.msra.mxu0 0.0
    %67 = vmatprep.subr.mxu0 0.0
    %68 = vmatpush1.msra.mxu0 0.0
    %69 = vmatprep.subr.mxu0 0.0
    %70 = vmatpush1.msra.mxu0 0.0
    %71 = vmatprep.subr.mxu0 0.0
    %72 = vmatpush1.msra.mxu0 0.0
    %73 = vmatprep.subr.mxu0 0.0
    %74 = vmatpush1.msra.mxu0 0.0
    %75 = vmatprep.subr.mxu0 0.0
    %76 = vmatpush1.msra.mxu0 0.0
    %77 = vmatprep.subr.mxu0 0.0
    %78 = vmatpush1.msra.mxu0 0.0
    %79 = vmatprep.subr.mxu0 0.0
    %80 = vmatpush1.msra.mxu0 0.0
    %81 = vmatprep.subr.mxu0 0.0
    %82 = vmatpush1.msra.mxu0 0.0
    %83 = vmatprep.subr.mxu0 0.0
    %84 = vmatpush1.msra.mxu0 0.0
    %85 = vmatprep.subr.mxu0 0.0
    %86 = vmatpush1.msra.mxu0 0.0
    %87 = vmatprep.subr.mxu0 0.0
    %88 = vmatpush1.msra.mxu0 0.0
    %89 = vmatprep.subr.mxu0 0.0
    %90 = vmatpush1.msra.mxu0 0.0
    %91 = vmatprep.subr.mxu0 0.0
    %92 = vmatpush1.msra.mxu0 0.0
    %93 = vmatprep.subr.mxu0 0.0
    %94 = vmatpush1.msra.mxu0 0.0
    %95 = vmatprep.subr.mxu0 0.0
    %96 = vmatpush1.msra.mxu0 0.0
    %97 = vmatprep.subr.mxu0 0.0
    %98 = vmatpush1.msra.mxu0 0.0
    %99 = vmatprep.subr.mxu0 0.0
    %100 = vmatpush1.msra.mxu0 0.0
    %101 = vmatprep.subr.mxu0 0.0
    %102 = vmatpush1.msra.mxu0 0.0
    %103 = vmatprep.subr.mxu0 0.0
    %104 = vmatpush1.msra.mxu0 0.0
    %105 = vmatprep.subr.mxu0 0.0
    %106 = vmatpush1.msra.mxu0 0.0
    %107 = vmatprep.subr.mxu0 0.0
    %108 = vmatpush1.msra.mxu0 0.0
    %109 = vmatprep.subr.mxu0 0.0
    %110 = vmatpush1.msra.mxu0 0.0
    %111 = vmatprep.subr.mxu0 0.0
    %112 = vmatpush1.msra.mxu0 0.0
    %113 = vmatprep.subr.mxu0 0.0
    %114 = vmatpush1.msra.mxu0 0.0
    %115 = vmatprep.mubr.f32.mxu0 0.0
    %116 = vmatmul.mubr.f32.gmra.mrb[0].mxu0 %v46
    %v117 = vpop.f32.mrb[0].mxu0
    %v118 = vadd.f32 0.0, %v117
    %v119 = vpop.f32.mrb[0].mxu0
    %120 = vmatprep.mubr.f32.mxu0 0.0
    %121 = vmatmul.mubr.f32.gmra.mrb[0].mxu0 %v49
    %v122 = vpop.f32.mrb[0].mxu0
    %v123 = vadd.f32 0.0, %v122
    %v124 = vpop.f32.mrb[0].mxu0
    %125 = vdwg.mxu0
    %vm126 = vcmask 261120
    %127 = vst.msk [vmem:[#allocation7] sm:$0xff] %vm126, %v118
    %128 = vst.msk [vmem:[#allocation7 + $0x8] sm:$0xff] %vm126, %v123
    // Predicated region
    $region18: #{tpu_custom_call.1} parent=1 // pred_check
      _
    $region19: #{tpu_custom_call.1} parent=1 // pred_check_branch
      %130 = sbr.rel (0) target = $region21
    $region20: #{tpu_custom_call.1} parent=1 // pred_region
      %s132 = ssub.s32 256, 256
      %133 = vsyncadd [#allocation4], %s132
      %s134 = sshll.u32 [#allocation7], 4
      %s135 = int_to_ptr.vmem [resolvable:$true] %s134
      %140 = dma.vmem_to_hbm [thread:$0]  %s135, 256, %s2, [#allocation4], 128, 128, 8
    $region21: #{tpu_custom_call.1} parent=1 // pred_fallthru
      _
    // Predicated region
    $region22: #{tpu_custom_call.1} parent=1 // pred_check
      _
    $region23: #{tpu_custom_call.1} parent=1 // pred_check_branch
      %142 = sbr.rel (0) target = $region25
    $region24: #{tpu_custom_call.1} parent=1 // pred_region
      %143 = dma.done [#allocation4], 256
    $region25: #{tpu_custom_call.1} parent=1 // pred_fallthru
      _
    %144 = vsyncpa [#allocation3], 1
    %145 = vsyncpa [#allocation6], 1
    %146 = vsyncpa [#allocation4], 1

</llo_original>
